<compile_context>
chip_gen: v7x
topology: tpu7x:2x2x1
jax: 0.10.0
libtpu: 0.0.40
codegen_flags: <defaults>
</compile_context>

<pallas_src>
import jax
import jax.numpy as jnp
import numpy as np
from jax.experimental import pallas as pl
from jax.experimental.pallas import tpu as pltpu

_LANES = 128


def _decoder_copy_kernel(x_ref, o_ref):
    # Reference Decoder.forward is `pass`; the only computation is identity.
    o_ref[...] = x_ref[...]


def _sublane_multiple(dtype) -> int:
    # f32 -> 8 sublanes, bf16/f16 -> 16, int8/fp8 -> 32 (packed sublanes).
    itemsize = jnp.dtype(dtype).itemsize
    return max(8, 32 // max(itemsize, 1))


def decoder_forward(embedded_inputs: jax.Array) -> jax.Array:
    """Pallas port of Decoder.forward (identity pass-through).

    embedded_inputs: [B, S, H]
    returns: [B, S, H]
    """
    orig_shape = embedded_inputs.shape
    dtype = embedded_inputs.dtype
    n = int(embedded_inputs.size)

    if n == 0:
        return embedded_inputs

    if n % _LANES == 0:
        # Lane-dense 2D layout: every row is a full 128-lane vector.
        rows = n // _LANES
        x2d = embedded_inputs.reshape(rows, _LANES)
        sub = _sublane_multiple(dtype)

        if rows % sub == 0 and rows > sub:
            # Large row tiles (cap ~2048 rows -> ~1 MiB/buffer for f32), grid
            # over row tiles; Pallas masks the ragged last block.
            tile_rows = min(rows, 2048)
            tile_rows = (tile_rows // sub) * sub
            grid = (pl.cdiv(rows, tile_rows),)
            block = (tile_rows, _LANES)
            index_map = lambda i: (i, 0)
        else:
            # Small input: single full-extent block (always legal).
            grid = (1,)
            block = (rows, _LANES)
            index_map = lambda i: (0, 0)

        out2d = pl.pallas_call(
            _decoder_copy_kernel,
            out_shape=jax.ShapeDtypeStruct((rows, _LANES), dtype),
            grid_spec=pltpu.PrefetchScalarGridSpec(
                num_scalar_prefetch=0,
                grid=grid,
                in_specs=[pl.BlockSpec(block, index_map)],
                out_specs=pl.BlockSpec(block, index_map),
            ),
            input_output_aliases={0: 0},
            compiler_params=pltpu.CompilerParams(
                dimension_semantics=("parallel",),
            ),
        )(x2d)
        return out2d.reshape(orig_shape)

    # Fallback (total elements not a multiple of 128): single full-extent
    # block on a flattened (1, n) view — last two block dims equal the full
    # array dims, so no (8, 128) divisibility requirement applies.
    x2d = embedded_inputs.reshape(1, n)
    out2d = pl.pallas_call(
        _decoder_copy_kernel,
        out_shape=jax.ShapeDtypeStruct((1, n), dtype),
        grid_spec=pltpu.PrefetchScalarGridSpec(
            num_scalar_prefetch=0,
            grid=(1,),
            in_specs=[pl.BlockSpec((1, n), lambda i: (0, 0))],
            out_specs=pl.BlockSpec((1, n), lambda i: (0, 0)),
        ),
        input_output_aliases={0: 0},
        compiler_params=pltpu.CompilerParams(
            dimension_semantics=("parallel",),
        ),
    )(x2d)
    return out2d.reshape(orig_shape)


if __name__ == "__main__":
    key = jax.random.PRNGKey(0)
    B, S, H = 2, 8, 32
    embedded_inputs = jax.random.normal(key, (B, S, H), dtype=jnp.float32)

    # Snapshot the expected values on host before the (aliased) kernel runs.
    expected = np.asarray(jax.device_get(embedded_inputs))

    out = decoder_forward(embedded_inputs)
    out = jax.block_until_ready(out)

    assert out.shape == (B, S, H)
    assert out.dtype == embedded_inputs.dtype
    assert np.allclose(np.asarray(jax.device_get(out)), expected)

    print("KERNEL_OK")
</pallas_src>

<mosaic_0001>
module attributes {stable_mosaic.version = 11 : i64} {
  func.func @_decoder_copy_kernel(%arg0: i32, %arg1: memref<4x128xf32, #tpu.memory_space<vmem>>, %arg2: memref<4x128xf32, #tpu.memory_space<vmem>>) attributes {dimension_semantics = [#tpu.dimension_semantics<parallel>], iteration_bounds = array<i64: 1>, scalar_prefetch = 0 : i64, scratch_operands = 0 : i64, tpu.core_type = #tpu.core_type<tc>, window_params = [{pipeline_mode = #tpu.pipeline_mode<synchronous>, transform_indices = @transform_0, window_bounds = array<i64: 4, 128>}, {pipeline_mode = #tpu.pipeline_mode<synchronous>, transform_indices = @transform_1, window_bounds = array<i64: 4, 128>}]} {
    %c0 = arith.constant 0 : index
    %c0_0 = arith.constant 0 : index
    %0 = vector.load %arg1[%c0, %c0_0] : memref<4x128xf32, #tpu.memory_space<vmem>>, vector<4x128xf32>
    %c0_1 = arith.constant 0 : index
    %c0_2 = arith.constant 0 : index
    %1 = vector.load %arg2[%c0_1, %c0_2] : memref<4x128xf32, #tpu.memory_space<vmem>>, vector<4x128xf32>
    tpu.vector_store %arg2[%c0_1, %c0_2], %0 {strides = array<i32>} : memref<4x128xf32, #tpu.memory_space<vmem>>, vector<4x128xf32>,
    return
  }
  func.func @transform_0(%arg0: i32) -> (i32, i32) {
    %c0_i32 = arith.constant 0 : i32
    %c0_i32_0 = arith.constant 0 : i32
    %c0_i32_1 = arith.constant 0 : i32
    return %c0_i32, %c0_i32_0 : i32, i32
  }
  func.func @transform_1(%arg0: i32) -> (i32, i32) {
    %c0_i32 = arith.constant 0 : i32
    %c0_i32_0 = arith.constant 0 : i32
    %c0_i32_1 = arith.constant 0 : i32
    return %c0_i32, %c0_i32_0 : i32, i32
  }
}

</mosaic_0001>

<llo_original>
// kernel: tpu_custom_call.1
$region0: #{tpu_custom_call.1}
  #allocation0 [shape = 'u32[]', space=smem, size = 0x4, offset = 0x4, fixed_abs, tag = 'smem constant byte address 0x4 - core index']
  #allocation1 [shape = 'u32[144,128]{1,0:T(1,128)}', space=vmem, size = 0x12000, scoped, tag = 'internal scratch']
  %s0 = inlined_call_operand.hbm [shape: f32[4,128], index: 0, kind: input, shape index: {}, may-alias: {0,1}]
  %s1 = inlined_call_operand.hbm [shape: f32[4,128], index: 1, kind: output, shape index: {}, may-alias: {0,1}]
  %s2 = sld [smem:[#allocation0]]
  $region18: #{tpu_custom_call.1} parent=0
    _
  %s4 = ssub.s32 1, %s2
  %s5 = scalar_select 0, %s4, %s2
  $region1: #{tpu_custom_call.1} parent=0
    #allocation2 [shape = 'u8[2048]{0}', space=vmem, size = 0x800, scoped, tag = 'input window, operand 0, single buffered']
    #allocation3 [shape = 's32[1]{0}', space=sflag, size = 0x4, scoped, tag = 'scoped memory for tpu_custom_call.1']
    #allocation4 [shape = 's32[1]{0}', space=sflag, size = 0x4, scoped, tag = 'scoped memory for tpu_custom_call.1']
    #allocation5 [shape = 'u8[2048]{0}', space=vmem, size = 0x800, scoped, tag = 'output window, operand 0, single buffered']
    %6 = vsyncpa [#allocation3], 0
    %7 = vsyncpa [#allocation4], 0
    // Predicated region
    $region2: #{tpu_custom_call.1} parent=1 // pred_check
      _
    $region3: #{tpu_custom_call.1} parent=1 // pred_check_branch
      %9 = sbr.rel (0) target = $region5
    $region4: #{tpu_custom_call.1} parent=1 // pred_region
      %s11 = ssub.s32 64, 64
      %12 = vsyncadd [#allocation3], %s11
      %s14 = sshll.u32 [#allocation2], 4
      %s15 = int_to_ptr.vmem [resolvable:$true] %s14
      %17 = dma.hbm_to_vmem [thread:$0]  %s0, 64, %s15, [#allocation3]
    $region5: #{tpu_custom_call.1} parent=1 // pred_fallthru
      _
    // Predicated region
    $region6: #{tpu_custom_call.1} parent=1 // pred_check
      _
    $region7: #{tpu_custom_call.1} parent=1 // pred_check_branch
      %19 = sbr.rel (0) target = $region9
    $region8: #{tpu_custom_call.1} parent=1 // pred_region
      %20 = dma.done [#allocation3], 64
    $region9: #{tpu_custom_call.1} parent=1 // pred_fallthru
      _
    %v21 = vld [vmem:[#allocation2] sm:$0xf]
    %22 = vst [vmem:[#allocation5] sm:$0xf] %v21
    // Predicated region
    $region10: #{tpu_custom_call.1} parent=1 // pred_check
      _
    $region11: #{tpu_custom_call.1} parent=1 // pred_check_branch
      %24 = sbr.rel (0) target = $region13
    $region12: #{tpu_custom_call.1} parent=1 // pred_region
      %s26 = ssub.s32 64, 64
      %27 = vsyncadd [#allocation4], %s26
      %s29 = sshll.u32 [#allocation5], 4
      %s30 = int_to_ptr.vmem [resolvable:$true] %s29
      %32 = dma.vmem_to_hbm [thread:$0]  %s30, 64, %s1, [#allocation4]
    $region13: #{tpu_custom_call.1} parent=1 // pred_fallthru
      _
    // Predicated region
    $region14: #{tpu_custom_call.1} parent=1 // pred_check
      _
    $region15: #{tpu_custom_call.1} parent=1 // pred_check_branch
      %34 = sbr.rel (0) target = $region17
    $region16: #{tpu_custom_call.1} parent=1 // pred_region
      %35 = dma.done [#allocation4], 64
    $region17: #{tpu_custom_call.1} parent=1 // pred_fallthru
      _
    %36 = vsyncpa [#allocation3], 1
    %37 = vsyncpa [#allocation4], 1

</llo_original>
